<compile_context>
chip_gen: v7x
topology: tpu7x:2x2x1
jax: 0.10.0
libtpu: 0.0.40
codegen_flags: <defaults>
</compile_context>

<pallas_src>
import functools

import jax
import jax.numpy as jnp
from jax.experimental import pallas as pl
from jax.experimental.pallas import tpu as pltpu


def _bn_kernel(x_ref, gamma_ref, beta_ref, o_ref, *, eps):
    # One (N, TD) channel-tile per grid step.  Reduction is over the batch
    # (sublane) axis; lanes (channels) are independent.
    x = x_ref[...].astype(jnp.float32)
    mean = jnp.mean(x, axis=0, keepdims=True)                  # (1, TD)
    diff = x - mean
    var = jnp.mean(diff * diff, axis=0, keepdims=True)         # biased variance
    inv_std = jax.lax.rsqrt(var + eps)
    # Fold affine into a single per-channel scale/shift -> fewer per-element
    # VPU ops and lower vreg pressure than diff*inv_std*gamma + beta.
    scale = inv_std * gamma_ref[...].astype(jnp.float32)       # (1, TD)
    shift = beta_ref[...].astype(jnp.float32) - mean * scale   # (1, TD)
    o_ref[...] = (x * scale + shift).astype(o_ref.dtype)


def _round_up(v, m):
    return ((v + m - 1) // m) * m


def linear_batch_norm(x, gamma, beta, *, eps=1e-5):
    """BatchNorm1d-via-BatchNorm2d forward (training-mode batch statistics).

    x: (N, D); gamma/beta: (D,).  Output dtype == input dtype.
    """
    # TODO(synk): running_mean/running_var buffer updates (PyTorch training-mode
    # side effect, unbiased variance) are not produced; only the normalized
    # output is returned.
    N, D = x.shape
    in_dtype = x.dtype

    # ---- channel-tile selection -------------------------------------------
    # Keep one f32 (N, TD) working block (upcast x + output + headroom) well
    # under the scoped-VMEM budget so double-buffered in/out pipelining fits
    # on every generation (v7x: 64 MiB physical / 32 MiB scoped).
    vmem_budget = 8 * 1024 * 1024                       # per-block target
    bytes_per_128_cols = max(N, 8) * 4 * 3 * 128        # x(f32) + out + slack
    td = max(128, (vmem_budget // bytes_per_128_cols) * 128)
    td = min(td, 1024)                                  # diminishing returns
    td = min(td, _round_up(D, 128))
    # TODO(synk): for batches so large that even (N, 128) blows the VMEM budget,
    # switch to a two-pass sum/sum-sq scheme with an N-tiled "arbitrary" axis.

    # Pad channels so D is a multiple of the tile (lane-dense loads/stores,
    # block last dim always divisible by 128).
    Dp = _round_up(D, td)
    if Dp != D:
        x = jnp.pad(x, ((0, 0), (0, Dp - D)))
        gamma = jnp.pad(gamma, (0, Dp - D))
        beta = jnp.pad(beta, (0, Dp - D))
    gamma2 = gamma.reshape(1, Dp).astype(jnp.float32)
    beta2 = beta.reshape(1, Dp).astype(jnp.float32)

    num_tiles = Dp // td
    elem_bytes = jnp.dtype(in_dtype).itemsize
    cost = pl.CostEstimate(
        flops=6 * N * Dp,
        transcendentals=Dp,
        bytes_accessed=2 * N * Dp * elem_bytes + 2 * Dp * 4,
    )

    out = pl.pallas_call(
        functools.partial(_bn_kernel, eps=eps),
        out_shape=jax.ShapeDtypeStruct((N, Dp), in_dtype),
        grid=(num_tiles,),
        in_specs=[
            pl.BlockSpec((N, td), lambda i: (0, i)),
            pl.BlockSpec((1, td), lambda i: (0, i)),
            pl.BlockSpec((1, td), lambda i: (0, i)),
        ],
        out_specs=pl.BlockSpec((N, td), lambda i: (0, i)),
        compiler_params=pltpu.CompilerParams(
            dimension_semantics=("parallel",),   # both TCs on v7x; no-op v5e/v6e
            vmem_limit_bytes=32 * 1024 * 1024,
        ),
        cost_estimate=cost,
    )(x, gamma2, beta2)

    if Dp != D:
        out = out[:, :D]
    return out


def _reference(x, gamma, beta, eps=1e-5):
    x32 = x.astype(jnp.float32)
    mean = jnp.mean(x32, axis=0, keepdims=True)
    var = jnp.mean((x32 - mean) ** 2, axis=0, keepdims=True)
    return ((x32 - mean) * jax.lax.rsqrt(var + eps) * gamma[None, :]
            + beta[None, :]).astype(x.dtype)


if __name__ == "__main__":
    dim = 32
    batch = 8

    key = jax.random.PRNGKey(0)
    kx, kg, kb = jax.random.split(key, 3)
    x = jax.random.normal(kx, (batch, dim), dtype=jnp.float32)
    # BatchNorm2d init is gamma=1, beta=0; perturb so the affine path is
    # actually exercised.
    gamma = 1.0 + 0.1 * jax.random.normal(kg, (dim,), dtype=jnp.float32)
    beta = 0.1 * jax.random.normal(kb, (dim,), dtype=jnp.float32)

    out = linear_batch_norm(x, gamma, beta)
    out = jax.block_until_ready(out)

    ref = _reference(x, gamma, beta)
    assert out.shape == (batch, dim)
    assert jnp.allclose(out, ref, atol=1e-5, rtol=1e-5)

    print("KERNEL_OK")
</pallas_src>

<mosaic_0001>
module attributes {stable_mosaic.version = 11 : i64} {
  func.func @_bn_kernel(%arg0: i32, %arg1: memref<8x128xf32, #tpu.memory_space<vmem>>, %arg2: memref<1x128xf32, #tpu.memory_space<vmem>>, %arg3: memref<1x128xf32, #tpu.memory_space<vmem>>, %arg4: memref<8x128xf32, #tpu.memory_space<vmem>>) attributes {dimension_semantics = [#tpu.dimension_semantics<parallel>], iteration_bounds = array<i64: 1>, scalar_prefetch = 0 : i64, scratch_operands = 0 : i64, tpu.core_type = #tpu.core_type<tc>, window_params = [{transform_indices = @transform_0, window_bounds = array<i64: 8, 128>}, {transform_indices = @transform_1, window_bounds = array<i64: 1, 128>}, {transform_indices = @transform_2, window_bounds = array<i64: 1, 128>}, {transform_indices = @transform_3, window_bounds = array<i64: 8, 128>}]} {
    %c0 = arith.constant 0 : index
    %c0_0 = arith.constant 0 : index
    %0 = vector.load %arg1[%c0, %c0_0] : memref<8x128xf32, #tpu.memory_space<vmem>>, vector<8x128xf32>
    %cst = arith.constant dense<0.000000e+00> : vector<128xf32>
    %1 = vector.multi_reduction <add>, %0, %cst [0] : vector<8x128xf32> to vector<128xf32>
    %2 = vector.shape_cast %1 : vector<128xf32> to vector<1x128xf32>
    %cst_1 = arith.constant 8.000000e+00 : f32
    %3 = vector.broadcast %cst_1 : f32 to vector<1x128xf32>
    %4 = arith.divf %2, %3 : vector<1x128xf32>
    %5 = vector.broadcast %4 : vector<1x128xf32> to vector<8x128xf32>
    %6 = arith.subf %0, %5 : vector<8x128xf32>
    %7 = arith.mulf %6, %6 : vector<8x128xf32>
    %cst_2 = arith.constant dense<0.000000e+00> : vector<128xf32>
    %8 = vector.multi_reduction <add>, %7, %cst_2 [0] : vector<8x128xf32> to vector<128xf32>
    %9 = vector.shape_cast %8 : vector<128xf32> to vector<1x128xf32>
    %cst_3 = arith.constant 8.000000e+00 : f32
    %10 = vector.broadcast %cst_3 : f32 to vector<1x128xf32>
    %11 = arith.divf %9, %10 : vector<1x128xf32>
    %cst_4 = arith.constant 9.99999974E-6 : f32
    %12 = vector.broadcast %cst_4 : f32 to vector<1x128xf32>
    %13 = arith.addf %11, %12 : vector<1x128xf32>
    %14 = math.rsqrt %13 : vector<1x128xf32>
    %c0_5 = arith.constant 0 : index
    %c0_6 = arith.constant 0 : index
    %15 = vector.load %arg2[%c0_5, %c0_6] : memref<1x128xf32, #tpu.memory_space<vmem>>, vector<1x128xf32>
    %16 = arith.mulf %14, %15 : vector<1x128xf32>
    %c0_7 = arith.constant 0 : index
    %c0_8 = arith.constant 0 : index
    %17 = vector.load %arg3[%c0_7, %c0_8] : memref<1x128xf32, #tpu.memory_space<vmem>>, vector<1x128xf32>
    %18 = arith.mulf %4, %16 : vector<1x128xf32>
    %19 = arith.subf %17, %18 : vector<1x128xf32>
    %20 = vector.broadcast %16 : vector<1x128xf32> to vector<8x128xf32>
    %21 = arith.mulf %0, %20 : vector<8x128xf32>
    %22 = vector.broadcast %19 : vector<1x128xf32> to vector<8x128xf32>
    %23 = arith.addf %21, %22 : vector<8x128xf32>
    %c0_9 = arith.constant 0 : index
    %c0_10 = arith.constant 0 : index
    %24 = vector.load %arg4[%c0_9, %c0_10] : memref<8x128xf32, #tpu.memory_space<vmem>>, vector<8x128xf32>
    tpu.vector_store %arg4[%c0_9, %c0_10], %23 {strides = array<i32>} : memref<8x128xf32, #tpu.memory_space<vmem>>, vector<8x128xf32>,
    return
  }
  func.func @transform_0(%arg0: i32) -> (i32, i32) {
    %c0_i32 = arith.constant 0 : i32
    %c0_i32_0 = arith.constant 0 : i32
    return %c0_i32, %arg0 : i32, i32
  }
  func.func @transform_1(%arg0: i32) -> (i32, i32) {
    %c0_i32 = arith.constant 0 : i32
    %c0_i32_0 = arith.constant 0 : i32
    return %c0_i32, %arg0 : i32, i32
  }
  func.func @transform_2(%arg0: i32) -> (i32, i32) {
    %c0_i32 = arith.constant 0 : i32
    %c0_i32_0 = arith.constant 0 : i32
    return %c0_i32, %arg0 : i32, i32
  }
  func.func @transform_3(%arg0: i32) -> (i32, i32) {
    %c0_i32 = arith.constant 0 : i32
    %c0_i32_0 = arith.constant 0 : i32
    return %c0_i32, %arg0 : i32, i32
  }
}

</mosaic_0001>

<llo_original>
// kernel: tpu_custom_call.1
$region0: #{tpu_custom_call.1}
  #allocation0 [shape = 'u32[]', space=smem, size = 0x4, offset = 0x4, fixed_abs, tag = 'smem constant byte address 0x4 - core index']
  #allocation1 [shape = 'u32[144,128]{1,0:T(1,128)}', space=vmem, size = 0x12000, scoped, tag = 'internal scratch']
  %s0 = inlined_call_operand.hbm [shape: f32[8,128], index: 0, kind: input, shape index: {}]
  %s1 = inlined_call_operand.vmem [shape: f32[1,128], index: 1, kind: input, shape index: {}]
  %s2 = inlined_call_operand.vmem [shape: f32[1,128], index: 2, kind: input, shape index: {}]
  %s3 = inlined_call_operand.hbm [shape: f32[8,128], index: 3, kind: output, shape index: {}]
  %s4 = sld [smem:[#allocation0]]
  $region26: #{tpu_custom_call.1} parent=0
    _
  %s6 = ssub.s32 1, %s4
  %s7 = scalar_select 0, %s6, %s4
  $region1: #{tpu_custom_call.1} parent=0
    #allocation2 [shape = 'u8[4096]{0}', space=vmem, size = 0x1000, scoped, tag = 'input window, operand 0, single buffered']
    #allocation3 [shape = 's32[1]{0}', space=sflag, size = 0x4, scoped, tag = 'scoped memory for tpu_custom_call.1']
    #allocation4 [shape = 's32[1]{0}', space=sflag, size = 0x4, scoped, tag = 'scoped memory for tpu_custom_call.1']
    #allocation5 [shape = 'u8[4096]{0}', space=vmem, size = 0x1000, scoped, tag = 'output window, operand 0, single buffered']
    %8 = vsyncpa [#allocation3], 0
    %9 = vsyncpa [#allocation4], 0
    // Predicated region
    $region2: #{tpu_custom_call.1} parent=1 // pred_check
      _
    $region3: #{tpu_custom_call.1} parent=1 // pred_check_branch
      %11 = sbr.rel (0) target = $region5
    $region4: #{tpu_custom_call.1} parent=1 // pred_region
      %s13 = ssub.s32 128, 128
      %14 = vsyncadd [#allocation3], %s13
      %s16 = sshll.u32 [#allocation2], 4
      %s17 = int_to_ptr.vmem [resolvable:$true] %s16
      %19 = dma.hbm_to_vmem [thread:$0]  %s0, 128, %s17, [#allocation3]
    $region5: #{tpu_custom_call.1} parent=1 // pred_fallthru
      _
    // Predicated region
    $region6: #{tpu_custom_call.1} parent=1 // pred_check
      _
    $region7: #{tpu_custom_call.1} parent=1 // pred_check_branch
      %21 = sbr.rel (0) target = $region9
    $region8: #{tpu_custom_call.1} parent=1 // pred_region
      _
    $region9: #{tpu_custom_call.1} parent=1 // pred_fallthru
      _
    // Predicated region
    $region10: #{tpu_custom_call.1} parent=1 // pred_check
      _
    $region11: #{tpu_custom_call.1} parent=1 // pred_check_branch
      %23 = sbr.rel (0) target = $region13
    $region12: #{tpu_custom_call.1} parent=1 // pred_region
      _
    $region13: #{tpu_custom_call.1} parent=1 // pred_fallthru
      _
    // Predicated region
    $region14: #{tpu_custom_call.1} parent=1 // pred_check
      _
    $region15: #{tpu_custom_call.1} parent=1 // pred_check_branch
      %25 = sbr.rel (0) target = $region17
    $region16: #{tpu_custom_call.1} parent=1 // pred_region
      %26 = dma.done [#allocation3], 128
    $region17: #{tpu_custom_call.1} parent=1 // pred_fallthru
      _
    %v27 = vld [vmem:[#allocation2] sm:$0xff]
    %v28 = vrot.slane %v27, 4
    %v29 = vadd.f32 %v27, %v28
    %v30 = vrot.slane %v29, 2
    %v31 = vadd.f32 %v29, %v30
    %v32 = vrot.slane %v31, 1
    %v33 = vadd.f32 %v31, %v32
    %v34 = vrcp.pop 8.0
    %v35 = vmul.f32 %v33, %v34
    %v36 = vsub.f32 %v27, %v35
    %v37 = vmul.f32 %v36, %v36
    %v38 = vrot.slane %v37, 4
    %v39 = vadd.f32 %v37, %v38
    %v40 = vrot.slane %v39, 2
    %v41 = vadd.f32 %v39, %v40
    %v42 = vrot.slane %v41, 1
    %v43 = vadd.f32 %v41, %v42
    %v44 = vmul.f32 %v43, %v34
    %v45 = vadd.f32 %v44, 1e-05
    %v46 = vrsqrt.pop %v45
    %v47 = vld [vmem:[%s1] sm:$0x1]
    %v48 = vmul.f32 %v46, %v47
    %v49 = vld [vmem:[%s2] sm:$0x1]
    %v50 = vmul.f32 %v35, %v48
    %v51 = vsub.f32 %v49, %v50
    %v52 = vlaneseq
    %v53 = vshrl.u32 %v52, 7
    %v54 = vsub.s32 0, %v53
    %v55 = vrot.slane %v48, %v54
    %v56 = vmul.f32 %v27, %v55
    %v58 = vlaneseq
    %v59 = vshrl.u32 %v58, 7
    %v60 = vsub.s32 0, %v59
    %v61 = vrot.slane %v51, %v60
    %v63 = vadd.f32 %v56, %v61
    %64 = vst [vmem:[#allocation5] sm:$0xff] %v63
    // Predicated region
    $region18: #{tpu_custom_call.1} parent=1 // pred_check
      _
    $region19: #{tpu_custom_call.1} parent=1 // pred_check_branch
      %66 = sbr.rel (0) target = $region21
    $region20: #{tpu_custom_call.1} parent=1 // pred_region
      %s68 = ssub.s32 128, 128
      %69 = vsyncadd [#allocation4], %s68
      %s71 = sshll.u32 [#allocation5], 4
      %s72 = int_to_ptr.vmem [resolvable:$true] %s71
      %74 = dma.vmem_to_hbm [thread:$0]  %s72, 128, %s3, [#allocation4]
    $region21: #{tpu_custom_call.1} parent=1 // pred_fallthru
      _
    // Predicated region
    $region22: #{tpu_custom_call.1} parent=1 // pred_check
      _
    $region23: #{tpu_custom_call.1} parent=1 // pred_check_branch
      %76 = sbr.rel (0) target = $region25
    $region24: #{tpu_custom_call.1} parent=1 // pred_region
      %77 = dma.done [#allocation4], 128
    $region25: #{tpu_custom_call.1} parent=1 // pred_fallthru
      _
    %78 = vsyncpa [#allocation3], 1
    %79 = vsyncpa [#allocation4], 1

</llo_original>
